<compile_context>
chip_gen: v6e
topology: v6e:2x2x1
jax: 0.10.0
libtpu: 0.0.40
codegen_flags: <defaults>
</compile_context>

<pallas_src>
import functools
import re

import jax
import jax.numpy as jnp
from jax.experimental import pallas as pl
from jax.experimental.pallas import tpu as pltpu


# ----------------------------------------------------------------------------
# Hardware queries
# ----------------------------------------------------------------------------
def _tpu_generation():
    try:
        kind = jax.devices()[0].device_kind
    except Exception:
        return 0
    m = re.search(r"(\d+)", str(kind))
    return int(m.group(1)) if m else 0


def _vmem_capacity_bytes():
    try:
        info = pltpu.get_tpu_info()
        cap = int(getattr(info, "vmem_capacity_bytes", 0) or 0)
        if cap > 0:
            return cap
    except Exception:
        pass
    return (64 << 20) if _tpu_generation() >= 7 else (128 << 20)


# ----------------------------------------------------------------------------
# Single-pass fused kernel (pool + MLP + sigmoid + apply)
# ----------------------------------------------------------------------------
def ca_kernel(x_ref, w1_ref, w2_ref, o_ref, *, hw_true, tb, mul_f32):
    # x_ref:  (TB, C, HW)   TB batch elements, true (unpadded) spatial extent
    # w1_ref: (Ch, C)       fc1 (1x1 conv) weight, Ch = C // ratio
    # w2_ref: (C, Ch)       fc2 (1x1 conv) weight
    x = x_ref[...]

    # Global average / max pool over the lane (spatial) axis.  The block spans
    # the full logical extent, so no explicit masking is needed.
    avg = jnp.sum(x, axis=-1, dtype=jnp.float32) * (1.0 / float(hw_true))  # (TB, C)
    mx = jnp.max(x, axis=-1).astype(jnp.float32)                           # (TB, C)

    # Fused shared MLP: one dot chain covers both pooling paths and all TB
    # images (RHS width 2*TB instead of four width-1 matmuls).
    pooled = jnp.concatenate([avg, mx], axis=0)                            # (2TB, C)
    w1 = w1_ref[...].astype(jnp.float32)
    w2 = w2_ref[...].astype(jnp.float32)
    h = jnp.maximum(
        jax.lax.dot_general(pooled, w1, (((1,), (1,)), ((), ())),
                            preferred_element_type=jnp.float32),
        0.0)                                                               # (2TB, Ch)
    out = jax.lax.dot_general(h, w2, (((1,), (1,)), ((), ())),
                              preferred_element_type=jnp.float32)          # (2TB, C)
    attn = jax.nn.sigmoid(out[:tb] + out[tb:])                             # (TB, C)

    # Fresh read of x for the epilogue multiply (no block-sized f32 temp kept
    # live across the MLP; bf16 multiply on v6e/v7x halves the VALU work).
    xin = x_ref[...]
    if mul_f32:
        o_ref[...] = (xin.astype(jnp.float32) * attn[:, :, None]).astype(o_ref.dtype)
    else:
        o_ref[...] = xin * attn.astype(o_ref.dtype)[:, :, None]


# ----------------------------------------------------------------------------
# Two-pass fallback (pool pass over channel chunks -> tiny MLP -> apply pass)
# ----------------------------------------------------------------------------
def _pool_kernel(x_ref, avg_ref, max_ref, *, hw_true):
    x = x_ref[...]                                                   # (1, tc, HW)
    s = jnp.sum(x, axis=-1, dtype=jnp.float32) * (1.0 / float(hw_true))
    m = jnp.max(x, axis=-1).astype(jnp.float32)
    avg_ref[...] = s[:, :, None]                                     # (1, tc, 1)
    max_ref[...] = m[:, :, None]


def _apply_kernel(attn_ref, x_ref, o_ref):
    # attn_ref: (1, tc, 1) f32, x_ref/o_ref: (1, tc, HW)
    o_ref[...] = (x_ref[...].astype(jnp.float32) * attn_ref[...]).astype(o_ref.dtype)


def _ca_two_pass(xr, w1, w2, *, N, C, HW, budget, vmem_cap):
    itemsize = jnp.dtype(xr.dtype).itemsize
    # Channel chunks keep the full spatial extent per block; chunk size must be
    # a multiple of 8 (sublane) or equal to C.
    tc_cands = sorted({d for d in range(1, C + 1)
                       if C % d == 0 and (d % 8 == 0 or d == C)})

    def chunk_fits(tc):
        return 4 * tc * HW * itemsize + 2 * tc * HW * 4 + (2 << 20) <= budget

    fitting = [d for d in tc_cands if chunk_fits(d)]
    tc = max(fitting) if fitting else min(tc_cands)
    num_c = C // tc
    chunk_bytes = tc * HW * itemsize
    vmem_limit = int(min(max(4 * chunk_bytes + 2 * tc * HW * 4 + (4 << 20),
                             16 << 20), vmem_cap))

    avg, mx = pl.pallas_call(
        functools.partial(_pool_kernel, hw_true=HW),
        out_shape=(jax.ShapeDtypeStruct((N, C, 1), jnp.float32),
                   jax.ShapeDtypeStruct((N, C, 1), jnp.float32)),
        grid_spec=pltpu.PrefetchScalarGridSpec(
            num_scalar_prefetch=0,
            grid=(N, num_c),
            in_specs=[pl.BlockSpec((1, tc, HW), lambda n, c: (n, c, 0))],
            out_specs=(pl.BlockSpec((1, tc, 1), lambda n, c: (n, c, 0)),
                       pl.BlockSpec((1, tc, 1), lambda n, c: (n, c, 0))),
        ),
        compiler_params=pltpu.CompilerParams(
            dimension_semantics=("parallel", "arbitrary"),
            vmem_limit_bytes=vmem_limit),
    )(xr)

    # TODO(synk): the (N, C)-sized shared MLP + sigmoid runs as plain JAX here;
    # it is negligible next to the two streaming passes.
    w1f = w1.astype(jnp.float32)
    w2f = w2.astype(jnp.float32)

    def mlp(p):
        h = jnp.maximum(p @ w1f.T, 0.0)
        return h @ w2f.T

    attn = jax.nn.sigmoid(mlp(avg[:, :, 0]) + mlp(mx[:, :, 0]))     # (N, C) f32
    attn3 = attn[:, :, None]                                        # (N, C, 1)

    out = pl.pallas_call(
        _apply_kernel,
        out_shape=jax.ShapeDtypeStruct((N, C, HW), xr.dtype),
        grid_spec=pltpu.PrefetchScalarGridSpec(
            num_scalar_prefetch=0,
            grid=(N, num_c),
            in_specs=[pl.BlockSpec((1, tc, 1), lambda n, c: (n, c, 0)),
                      pl.BlockSpec((1, tc, HW), lambda n, c: (n, c, 0))],
            out_specs=pl.BlockSpec((1, tc, HW), lambda n, c: (n, c, 0)),
        ),
        compiler_params=pltpu.CompilerParams(
            dimension_semantics=("parallel", "arbitrary"),
            vmem_limit_bytes=vmem_limit),
    )(attn3, xr)
    return out


# ----------------------------------------------------------------------------
# Wrapper
# ----------------------------------------------------------------------------
def ca_forward(x, w1, w2, *, max_batch_block=None, vmem_budget_bytes=None,
               force_two_pass=False):
    """Channel-attention forward. x: (N, C, H, W); w1: (C//r, C); w2: (C, C//r)."""
    N, C, H, W = x.shape
    Ch = w1.shape[0]
    HW = H * W
    xr = x.reshape(N, C, HW)                     # no spatial padding, no slicing

    itemsize = jnp.dtype(x.dtype).itemsize
    gen = _tpu_generation()
    cap = _vmem_capacity_bytes()
    small_vmem = gen >= 7 or cap <= (64 << 20)

    if vmem_budget_bytes is None:
        budget = (36 << 20) if small_vmem else (96 << 20)
    else:
        budget = int(vmem_budget_bytes)
    vmem_cap = (48 << 20) if small_vmem else (100 << 20)
    vmem_cap = max(16 << 20, min(vmem_cap, cap))

    weight_bytes = int(w1.size + w2.size) * jnp.dtype(w1.dtype).itemsize
    bytes_per_img = C * HW * itemsize
    # One f32 temp of the block may materialize for non-f32 inputs (upcast of
    # the sum reduction); budget it explicitly.
    f32_temp_per_img = 0 if itemsize == 4 else C * HW * 4

    def fits(tb):
        return (4 * tb * bytes_per_img + tb * f32_temp_per_img
                + 2 * weight_bytes + (2 << 20)) <= budget

    candidates = [d for d in range(1, N + 1) if N % d == 0]
    if max_batch_block is not None:
        candidates = [d for d in candidates if d <= max_batch_block]
    fitting = [d for d in candidates if fits(d)]

    if force_two_pass or not fitting:
        out = _ca_two_pass(xr, w1, w2, N=N, C=C, HW=HW,
                           budget=budget, vmem_cap=vmem_cap)
        return out.reshape(N, C, H, W)

    # Pick TB = largest fitting divisor of N; on v7x prefer an even number of
    # grid steps so the two TensorCores split the "parallel" batch axis evenly.
    if gen >= 7 and N >= 2:
        pref = [d for d in fitting if (N // d) % 2 == 0]
        pool = pref if pref else fitting
    else:
        pool = fitting
    tb = max(pool)
    num_steps = N // tb
    block_bytes = tb * bytes_per_img

    # Small blocks + almost-no-compute body -> deepen input pipelining.
    use_triple = block_bytes < (1 << 20) and num_steps >= 3
    x_spec_kwargs = {"pipeline_mode": pl.Buffered(3)} if use_triple else {}
    in_bufs = 3 if use_triple else 2

    needed = ((in_bufs + 2) * block_bytes + tb * f32_temp_per_img
              + 2 * weight_bytes + (2 << 20))
    vmem_limit = int(min(max(needed, 16 << 20), vmem_cap))

    mul_f32 = (x.dtype == jnp.float32) or gen < 6

    kernel = functools.partial(ca_kernel, hw_true=HW, tb=tb, mul_f32=mul_f32)

    cost = pl.CostEstimate(
        flops=int(3 * N * C * HW + 8 * N * C * Ch),
        transcendentals=int(N * C),
        bytes_accessed=int(2 * N * bytes_per_img + 2 * weight_bytes),
    )

    out = pl.pallas_call(
        kernel,
        out_shape=jax.ShapeDtypeStruct((N, C, HW), x.dtype),
        grid_spec=pltpu.PrefetchScalarGridSpec(
            num_scalar_prefetch=0,
            grid=(num_steps,),
            in_specs=[
                pl.BlockSpec((tb, C, HW), lambda n: (n, 0, 0), **x_spec_kwargs),
                pl.BlockSpec((Ch, C), lambda n: (0, 0)),
                pl.BlockSpec((C, Ch), lambda n: (0, 0)),
            ],
            out_specs=pl.BlockSpec((tb, C, HW), lambda n: (n, 0, 0)),
        ),
        compiler_params=pltpu.CompilerParams(
            dimension_semantics=("parallel",),
            vmem_limit_bytes=vmem_limit),
        cost_estimate=cost,
    )(xr, w1, w2)

    return out.reshape(N, C, H, W)


# ----------------------------------------------------------------------------
# Pure-JAX reference of the PyTorch module
# ----------------------------------------------------------------------------
def ca_reference(x, w1, w2):
    avg = jnp.mean(x, axis=(2, 3))                       # (N, C)
    mx = jnp.max(x, axis=(2, 3))                         # (N, C)

    def mlp(p):
        h = jnp.maximum(p @ w1.T, 0.0)                   # (N, Ch)
        return h @ w2.T                                  # (N, C)

    attn = jax.nn.sigmoid(mlp(avg) + mlp(mx))            # (N, C)
    return x * attn[:, :, None, None]


if __name__ == "__main__":
    key = jax.random.PRNGKey(0)

    configs = [
        # (N, C, H, W, ratio, extra kwargs)
        (2, 32, 16, 16, 8, {}),                                   # HW=256, lane-aligned
        (8, 16, 12, 12, 4, {}),                                   # HW=144, unpadded ragged lanes
        (6, 32, 16, 16, 8, {"max_batch_block": 1}),               # triple-buffered tiny blocks
        (2, 32, 16, 16, 8, {"force_two_pass": True,               # pool+apply fallback path
                            "vmem_budget_bytes": 2_150_000}),
    ]

    ok = True
    for (N, C, H, W, ratio, kwargs) in configs:
        Ch = C // ratio
        key, kx, k1, k2 = jax.random.split(key, 4)
        x = jax.random.normal(kx, (N, C, H, W), dtype=jnp.float32)
        # deterministic kaiming-uniform-like init for the two 1x1 conv weights
        w1 = jax.random.uniform(k1, (Ch, C), dtype=jnp.float32,
                                minval=-1.0, maxval=1.0) / jnp.sqrt(C)
        w2 = jax.random.uniform(k2, (C, Ch), dtype=jnp.float32,
                                minval=-1.0, maxval=1.0) / jnp.sqrt(Ch)

        y = ca_forward(x, w1, w2, **kwargs)
        jax.block_until_ready(y)

        y_ref = ca_reference(x, w1, w2)
        ok = ok and bool(jnp.allclose(y, y_ref, atol=1e-5, rtol=1e-5))

    assert ok, "mismatch vs reference"
    print("KERNEL_OK")
</pallas_src>

<mosaic_0001>
module attributes {stable_mosaic.version = 11 : i64} {
  func.func @ca_kernel(%arg0: i32, %arg1: memref<2x32x256xf32, #tpu.memory_space<vmem>>, %arg2: memref<4x32xf32, #tpu.memory_space<vmem>>, %arg3: memref<32x4xf32, #tpu.memory_space<vmem>>, %arg4: memref<2x32x256xf32, #tpu.memory_space<vmem>>) attributes {dimension_semantics = [#tpu.dimension_semantics<parallel>], iteration_bounds = array<i64: 1>, scalar_prefetch = 0 : i64, scratch_operands = 0 : i64, tpu.core_type = #tpu.core_type<tc>, window_params = [{transform_indices = @transform_0, window_bounds = array<i64: 2, 32, 256>}, {pipeline_mode = #tpu.pipeline_mode<synchronous>, transform_indices = @transform_1, window_bounds = array<i64: 4, 32>}, {pipeline_mode = #tpu.pipeline_mode<synchronous>, transform_indices = @transform_2, window_bounds = array<i64: 32, 4>}, {transform_indices = @transform_3, window_bounds = array<i64: 2, 32, 256>}]} {
    %c0 = arith.constant 0 : index
    %c0_0 = arith.constant 0 : index
    %c0_1 = arith.constant 0 : index
    %0 = vector.load %arg1[%c0, %c0_0, %c0_1] : memref<2x32x256xf32, #tpu.memory_space<vmem>>, vector<2x32x256xf32>
    %cst = arith.constant dense<0.000000e+00> : vector<2x32xf32>
    %1 = vector.multi_reduction <add>, %0, %cst [2] : vector<2x32x256xf32> to vector<2x32xf32>
    %cst_2 = arith.constant 3.906250e-03 : f32
    %2 = vector.broadcast %cst_2 : f32 to vector<2x32xf32>
    %3 = arith.mulf %1, %2 : vector<2x32xf32>
    %cst_3 = arith.constant dense<0xFF800000> : vector<2x32xf32>
    %4 = vector.multi_reduction <maximumf>, %0, %cst_3 [2] : vector<2x32x256xf32> to vector<2x32xf32>
    %5 = tpu.concatenate %3, %4 in 0 : vector<2x32xf32>, vector<2x32xf32> -> vector<4x32xf32>
    %c0_4 = arith.constant 0 : index
    %c0_5 = arith.constant 0 : index
    %6 = vector.load %arg2[%c0_4, %c0_5] : memref<4x32xf32, #tpu.memory_space<vmem>>, vector<4x32xf32>
    %c0_6 = arith.constant 0 : index
    %c0_7 = arith.constant 0 : index
    %7 = vector.load %arg3[%c0_6, %c0_7] : memref<32x4xf32, #tpu.memory_space<vmem>>, vector<32x4xf32>
    %cst_8 = arith.constant dense<0.000000e+00> : vector<4x4xf32>
    %8 = tpu.matmul %5, %6, %cst_8 {dimension_numbers = #tpu.dot_dimension_numbers<[1], [1], [0], [0], [0, 0, 1, 0], [], []>} : vector<4x32xf32>, vector<4x32xf32>, vector<4x4xf32> -> vector<4x4xf32>
    %cst_9 = arith.constant 0.000000e+00 : f32
    %9 = vector.broadcast %cst_9 : f32 to vector<4x4xf32>
    %10 = arith.maximumf %8, %9 : vector<4x4xf32>
    %cst_10 = arith.constant dense<0.000000e+00> : vector<4x32xf32>
    %11 = tpu.matmul %10, %7, %cst_10 {dimension_numbers = #tpu.dot_dimension_numbers<[1], [1], [0], [0], [0, 0, 1, 0], [], []>} : vector<4x4xf32>, vector<32x4xf32>, vector<4x32xf32> -> vector<4x32xf32>
    %12 = vector.extract_strided_slice %11 {offsets = [0, 0], sizes = [2, 32], strides = [1, 1]} : vector<4x32xf32> to vector<2x32xf32>
    %13 = vector.extract_strided_slice %11 {offsets = [2, 0], sizes = [2, 32], strides = [1, 1]} : vector<4x32xf32> to vector<2x32xf32>
    %14 = arith.addf %12, %13 : vector<2x32xf32>
    %15 = arith.negf %14 : vector<2x32xf32>
    %16 = math.exp %15 : vector<2x32xf32>
    %cst_11 = arith.constant 1.000000e+00 : f32
    %17 = vector.broadcast %cst_11 : f32 to vector<2x32xf32>
    %18 = arith.addf %17, %16 : vector<2x32xf32>
    %19 = arith.divf %17, %18 : vector<2x32xf32>
    %c0_12 = arith.constant 0 : index
    %c0_13 = arith.constant 0 : index
    %c0_14 = arith.constant 0 : index
    %20 = vector.load %arg1[%c0_12, %c0_13, %c0_14] : memref<2x32x256xf32, #tpu.memory_space<vmem>>, vector<2x32x256xf32>
    %21 = vector.shape_cast %19 : vector<2x32xf32> to vector<2x32x1xf32>
    %22 = vector.broadcast %21 : vector<2x32x1xf32> to vector<2x32x256xf32>
    %23 = arith.mulf %20, %22 : vector<2x32x256xf32>
    %c0_15 = arith.constant 0 : index
    %c0_16 = arith.constant 0 : index
    %c0_17 = arith.constant 0 : index
    %24 = vector.load %arg4[%c0_15, %c0_16, %c0_17] : memref<2x32x256xf32, #tpu.memory_space<vmem>>, vector<2x32x256xf32>
    tpu.vector_store %arg4[%c0_15, %c0_16, %c0_17], %23 {strides = array<i32>} : memref<2x32x256xf32, #tpu.memory_space<vmem>>, vector<2x32x256xf32>,
    return
  }
  func.func @transform_0(%arg0: i32) -> (i32, i32, i32) {
    %c0_i32 = arith.constant 0 : i32
    %c0_i32_0 = arith.constant 0 : i32
    %c0_i32_1 = arith.constant 0 : i32
    return %arg0, %c0_i32, %c0_i32_0 : i32, i32, i32
  }
  func.func @transform_1(%arg0: i32) -> (i32, i32) {
    %c0_i32 = arith.constant 0 : i32
    %c0_i32_0 = arith.constant 0 : i32
    %c0_i32_1 = arith.constant 0 : i32
    return %c0_i32, %c0_i32_0 : i32, i32
  }
  func.func @transform_2(%arg0: i32) -> (i32, i32) {
    %c0_i32 = arith.constant 0 : i32
    %c0_i32_0 = arith.constant 0 : i32
    %c0_i32_1 = arith.constant 0 : i32
    return %c0_i32, %c0_i32_0 : i32, i32
  }
  func.func @transform_3(%arg0: i32) -> (i32, i32, i32) {
    %c0_i32 = arith.constant 0 : i32
    %c0_i32_0 = arith.constant 0 : i32
    %c0_i32_1 = arith.constant 0 : i32
    return %arg0, %c0_i32, %c0_i32_0 : i32, i32, i32
  }
}

</mosaic_0001>

<llo_original>
// kernel: tpu_custom_call.1
$region0: #{tpu_custom_call.1}
  #allocation0 [shape = 'u32[]', space=smem, size = 0x4, offset = 0x4, fixed_abs, tag = 'smem constant byte address 0x4 - core index']
  #allocation1 [shape = 'u32[144,128]{1,0:T(1,128)}', space=vmem, size = 0x12000, scoped, tag = 'internal scratch']
  %s0 = inlined_call_operand.hbm [shape: f32[2,32,256], index: 0, kind: input, shape index: {}]
  %s1 = inlined_call_operand.vmem [shape: f32[4,32], index: 1, kind: input, shape index: {}]
  %s2 = inlined_call_operand.vmem [shape: f32[32,4], index: 2, kind: input, shape index: {}]
  %s3 = inlined_call_operand.hbm [shape: f32[2,32,256], index: 3, kind: output, shape index: {}]
  %s4 = sld [smem:[#allocation0]]
  $region26: #{tpu_custom_call.1} parent=0
    _
  %s6 = ssub.s32 1, %s4
  %s7 = scalar_select 0, %s6, %s4
  $region1: #{tpu_custom_call.1} parent=0
    #allocation2 [shape = 'u8[65536]{0}', space=vmem, size = 0x10000, scoped, tag = 'input window, operand 0, single buffered']
    #allocation3 [shape = 's32[1]{0}', space=sflag, size = 0x4, scoped, tag = 'scoped memory for tpu_custom_call.1']
    #allocation4 [shape = 's32[1]{0}', space=sflag, size = 0x4, scoped, tag = 'scoped memory for tpu_custom_call.1']
    #allocation5 [shape = 'u8[65536]{0}', space=vmem, size = 0x10000, scoped, tag = 'output window, operand 0, single buffered']
    %8 = vsyncpa [#allocation3], 0
    %9 = vsyncpa [#allocation4], 0
    // Predicated region
    $region2: #{tpu_custom_call.1} parent=1 // pred_check
      _
    $region3: #{tpu_custom_call.1} parent=1 // pred_check_branch
      %11 = sbr.rel (0) target = $region5
    $region4: #{tpu_custom_call.1} parent=1 // pred_region
      %s13 = ssub.s32 2048, 2048
      %14 = vsyncadd [#allocation3], %s13
      %s15 = sshll.u32 [#allocation2], 4
      %s16 = int_to_ptr.vmem [resolvable:$true] %s15
      %21 = dma.hbm_to_vmem [thread:$0]  %s0, 2048, %s16, [#allocation3], 256, 256, 16
    $region5: #{tpu_custom_call.1} parent=1 // pred_fallthru
      _
    // Predicated region
    $region6: #{tpu_custom_call.1} parent=1 // pred_check
      _
    $region7: #{tpu_custom_call.1} parent=1 // pred_check_branch
      %23 = sbr.rel (0) target = $region9
    $region8: #{tpu_custom_call.1} parent=1 // pred_region
      _
    $region9: #{tpu_custom_call.1} parent=1 // pred_fallthru
      _
    // Predicated region
    $region10: #{tpu_custom_call.1} parent=1 // pred_check
      _
    $region11: #{tpu_custom_call.1} parent=1 // pred_check_branch
      %25 = sbr.rel (0) target = $region13
    $region12: #{tpu_custom_call.1} parent=1 // pred_region
      _
    $region13: #{tpu_custom_call.1} parent=1 // pred_fallthru
      _
    // Predicated region
    $region14: #{tpu_custom_call.1} parent=1 // pred_check
      _
    $region15: #{tpu_custom_call.1} parent=1 // pred_check_branch
      %27 = sbr.rel (0) target = $region17
    $region16: #{tpu_custom_call.1} parent=1 // pred_region
      %28 = dma.done [#allocation3], 2048
    $region17: #{tpu_custom_call.1} parent=1 // pred_fallthru
      _
    %v29 = vld [vmem:[#allocation2] sm:$0xff]
    %v30 = vld [vmem:[#allocation2 + $0x8] sm:$0xff]
    %v31 = vld [vmem:[#allocation2 + $0x10] sm:$0xff]
    %v32 = vld [vmem:[#allocation2 + $0x18] sm:$0xff]
    %v33 = vld [vmem:[#allocation2 + $0x20] sm:$0xff]
    %v34 = vld [vmem:[#allocation2 + $0x28] sm:$0xff]
    %v35 = vld [vmem:[#allocation2 + $0x30] sm:$0xff]
    %v36 = vld [vmem:[#allocation2 + $0x38] sm:$0xff]
    %v37 = vld [vmem:[#allocation2 + $0x40] sm:$0xff]
    %v38 = vld [vmem:[#allocation2 + $0x48] sm:$0xff]
    %v39 = vld [vmem:[#allocation2 + $0x50] sm:$0xff]
    %v40 = vld [vmem:[#allocation2 + $0x58] sm:$0xff]
    %v41 = vld [vmem:[#allocation2 + $0x60] sm:$0xff]
    %v42 = vld [vmem:[#allocation2 + $0x68] sm:$0xff]
    %v43 = vld [vmem:[#allocation2 + $0x70] sm:$0xff]
    %v44 = vld [vmem:[#allocation2 + $0x78] sm:$0xff]
    %v45 = vadd.f32 %v29, %v30
    %46 = vadd.xlane.f32.xlu0 %v45
    %v47 = vpop.xlane.xlu0 %46
    %v48 = vadd.f32 %v31, %v32
    %49 = vadd.xlane.f32.xlu0 %v48
    %v50 = vpop.xlane.xlu0 %49
    %v51 = vadd.f32 %v33, %v34
    %52 = vadd.xlane.f32.xlu0 %v51
    %v53 = vpop.xlane.xlu0 %52
    %v54 = vadd.f32 %v35, %v36
    %55 = vadd.xlane.f32.xlu0 %v54
    %v56 = vpop.xlane.xlu0 %55
    %v57 = vadd.f32 %v37, %v38
    %58 = vadd.xlane.f32.xlu0 %v57
    %v59 = vpop.xlane.xlu0 %58
    %v60 = vadd.f32 %v39, %v40
    %61 = vadd.xlane.f32.xlu0 %v60
    %v62 = vpop.xlane.xlu0 %61
    %v63 = vadd.f32 %v41, %v42
    %64 = vadd.xlane.f32.xlu0 %v63
    %v65 = vpop.xlane.xlu0 %64
    %v66 = vadd.f32 %v43, %v44
    %67 = vadd.xlane.f32.xlu0 %v66
    %v68 = vpop.xlane.xlu0 %67
    %v69 = vmul.f32 %v47, 0.00390625
    %v70 = vmul.f32 %v50, 0.00390625
    %v71 = vmul.f32 %v53, 0.00390625
    %v72 = vmul.f32 %v56, 0.00390625
    %v73 = vmul.f32 %v59, 0.00390625
    %v74 = vmul.f32 %v62, 0.00390625
    %v75 = vmul.f32 %v65, 0.00390625
    %v76 = vmul.f32 %v68, 0.00390625
    %v77 = vmax.f32 %v29, %v30
    %78 = vmax.xlane.f32.xlu0 %v77
    %v79 = vpop.xlane.xlu0 %78
    %v80 = vmax.f32 %v31, %v32
    %81 = vmax.xlane.f32.xlu0 %v80
    %v82 = vpop.xlane.xlu0 %81
    %v83 = vmax.f32 %v33, %v34
    %84 = vmax.xlane.f32.xlu0 %v83
    %v85 = vpop.xlane.xlu0 %84
    %v86 = vmax.f32 %v35, %v36
    %87 = vmax.xlane.f32.xlu0 %v86
    %v88 = vpop.xlane.xlu0 %87
    %v89 = vmax.f32 %v37, %v38
    %90 = vmax.xlane.f32.xlu0 %v89
    %v91 = vpop.xlane.xlu0 %90
    %v92 = vmax.f32 %v39, %v40
    %93 = vmax.xlane.f32.xlu0 %v92
    %v94 = vpop.xlane.xlu0 %93
    %v95 = vmax.f32 %v41, %v42
    %96 = vmax.xlane.f32.xlu0 %v95
    %v97 = vpop.xlane.xlu0 %96
    %v98 = vmax.f32 %v43, %v44
    %99 = vmax.xlane.f32.xlu0 %v98
    %v100 = vpop.xlane.xlu0 %99
    %v109 = vlaneseq
    %v110 = vand.u32 %v109, 127
    %v111 = vlaneseq
    %v112 = vshrl.u32 %v111, 7
    %v113 = vsub.s32 %v110, %v112
    %v114 = vrot.slane %v69, %v113
    %v115 = vadd.s32 %v110, 4294967288
    %v116 = vlaneseq
    %v117 = vshrl.u32 %v116, 7
    %v118 = vsub.s32 %v115, %v117
    %v119 = vrot.slane %v70, %v118
    %vm120 = vcmask 130112
    %v121 = vsel %vm120, %v119, %v114
    %v122 = vadd.s32 %v110, 4294967280
    %v123 = vlaneseq
    %v124 = vshrl.u32 %v123, 7
    %v125 = vsub.s32 %v122, %v124
    %v126 = vrot.slane %v71, %v125
    %vm127 = vcmask 195712
    %v128 = vsel %vm127, %v126, %v121
    %v129 = vadd.s32 %v110, 4294967272
    %v130 = vlaneseq
    %v131 = vshrl.u32 %v130, 7
    %v132 = vsub.s32 %v129, %v131
    %v133 = vrot.slane %v72, %v132
    %vm134 = vcmask 261312
    %v135 = vsel %vm134, %v133, %v128
    %v136 = vlaneseq
    %v137 = vshrl.u32 %v136, 7
    %v138 = vsub.s32 %v110, %v137
    %v139 = vrot.slane %v73, %v138
    %v140 = vlaneseq
    %v141 = vshrl.u32 %v140, 7
    %v142 = vsub.s32 %v115, %v141
    %v143 = vrot.slane %v74, %v142
    %v144 = vsel %vm120, %v143, %v139
    %v145 = vlaneseq
    %v146 = vshrl.u32 %v145, 7
    %v147 = vsub.s32 %v122, %v146
    %v148 = vrot.slane %v75, %v147
    %v149 = vsel %vm127, %v148, %v144
    %v150 = vlaneseq
    %v151 = vshrl.u32 %v150, 7
    %v152 = vsub.s32 %v129, %v151
    %v153 = vrot.slane %v76, %v152
    %v154 = vsel %vm134, %v153, %v149
    %vm155 = vcmask 1041409
    %v156 = vsel %vm155, %v154, %v135
    %v166 = vlaneseq
    %v167 = vshrl.u32 %v166, 7
    %v168 = vsub.s32 %v110, %v167
    %v169 = vrot.slane %v79, %v168
    %v170 = vlaneseq
    %v171 = vshrl.u32 %v170, 7
    %v172 = vsub.s32 %v115, %v171
    %v173 = vrot.slane %v82, %v172
    %v174 = vsel %vm120, %v173, %v169
    %v175 = vlaneseq
    %v176 = vshrl.u32 %v175, 7
    %v177 = vsub.s32 %v122, %v176
    %v178 = vrot.slane %v85, %v177
    %v179 = vsel %vm127, %v178, %v174
    %v180 = vlaneseq
    %v181 = vshrl.u32 %v180, 7
    %v182 = vsub.s32 %v129, %v181
    %v183 = vrot.slane %v88, %v182
    %v184 = vsel %vm134, %v183, %v179
    %v185 = vlaneseq
    %v186 = vshrl.u32 %v185, 7
    %v187 = vsub.s32 %v110, %v186
    %v188 = vrot.slane %v91, %v187
    %v189 = vlaneseq
    %v190 = vshrl.u32 %v189, 7
    %v191 = vsub.s32 %v115, %v190
    %v192 = vrot.slane %v94, %v191
    %v193 = vsel %vm120, %v192, %v188
    %v194 = vlaneseq
    %v195 = vshrl.u32 %v194, 7
    %v196 = vsub.s32 %v122, %v195
    %v197 = vrot.slane %v97, %v196
    %v198 = vsel %vm127, %v197, %v193
    %v199 = vlaneseq
    %v200 = vshrl.u32 %v199, 7
    %v201 = vsub.s32 %v129, %v200
    %v202 = vrot.slane %v100, %v201
    %v203 = vsel %vm134, %v202, %v198
    %vm204 = vcmask 1043459
    %v205 = vsel %vm204, %v203, %v184
    %vm207 = vcmask 1041408
    %v208 = vsel %vm207, %v156, %v205
    %v209 = vld [vmem:[%s1] sm:$0xf]
    %v210 = vld [vmem:[%s2] sm:$0xff]
    %v211 = vld [vmem:[%s2 + $0x8] sm:$0xff]
    %v212 = vld [vmem:[%s2 + $0x10] sm:$0xff]
    %v213 = vld [vmem:[%s2 + $0x18] sm:$0xff]
    %vm214 = vcmask 261120
    %v216 = vsel %vm214, %v208, 0
    %v219 = vsel %vm214, %v209, 0
    %221 = vmatprep.subr.mxu0 0.0
    %222 = vmatpush1.xpose.msra.mxu0 0.0
    %223 = vmatprep.subr.mxu0 0.0
    %224 = vmatpush1.xpose.msra.mxu0 0.0
    %225 = vmatprep.subr.mxu0 0.0
    %226 = vmatpush1.xpose.msra.mxu0 0.0
    %227 = vmatprep.subr.mxu0 0.0
    %228 = vmatpush1.xpose.msra.mxu0 0.0
    %229 = vmatprep.subr.mxu0 0.0
    %230 = vmatpush1.xpose.msra.mxu0 0.0
    %231 = vmatprep.subr.mxu0 0.0
    %232 = vmatpush1.xpose.msra.mxu0 0.0
    %233 = vmatprep.subr.mxu0 0.0
    %234 = vmatpush1.xpose.msra.mxu0 0.0
    %235 = vmatprep.subr.mxu0 0.0
    %236 = vmatpush1.xpose.msra.mxu0 0.0
    %237 = vmatprep.subr.mxu0 0.0
    %238 = vmatpush1.xpose.msra.mxu0 0.0
    %239 = vmatprep.subr.mxu0 0.0
    %240 = vmatpush1.xpose.msra.mxu0 0.0
    %241 = vmatprep.subr.mxu0 0.0
    %242 = vmatpush1.xpose.msra.mxu0 0.0
    %243 = vmatprep.subr.mxu0 0.0
    %244 = vmatpush1.xpose.msra.mxu0 0.0
    %245 = vmatprep.subr.mxu0 0.0
    %246 = vmatpush1.xpose.msra.mxu0 0.0
    %247 = vmatprep.subr.mxu0 0.0
    %248 = vmatpush1.xpose.msra.mxu0 0.0
    %249 = vmatprep.subr.mxu0 0.0
    %250 = vmatpush1.xpose.msra.mxu0 0.0
    %251 = vmatprep.subr.mxu0 0.0
    %252 = vmatpush1.xpose.msra.mxu0 %v219
    %253 = vmatprep.subr.mxu0 0.0
    %254 = vmatpush2.xpose.msra.mxu0 0.0
    %255 = vmatprep.subr.mxu0 0.0
    %256 = vmatpush2.xpose.msra.mxu0 0.0
    %257 = vmatprep.subr.mxu0 0.0
    %258 = vmatpush2.xpose.msra.mxu0 0.0
    %259 = vmatprep.subr.mxu0 0.0
    %260 = vmatpush2.xpose.msra.mxu0 0.0
    %261 = vmatprep.subr.mxu0 0.0
    %262 = vmatpush2.xpose.msra.mxu0 0.0
    %263 = vmatprep.subr.mxu0 0.0
    %264 = vmatpush2.xpose.msra.mxu0 0.0
    %265 = vmatprep.subr.mxu0 0.0
    %266 = vmatpush2.xpose.msra.mxu0 0.0
    %267 = vmatprep.subr.mxu0 0.0
    %268 = vmatpush2.xpose.msra.mxu0 0.0
    %269 = vmatprep.subr.mxu0 0.0
    %270 = vmatpush2.xpose.msra.mxu0 0.0
    %271 = vmatprep.subr.mxu0 0.0
    %272 = vmatpush2.xpose.msra.mxu0 0.0
    %273 = vmatprep.subr.mxu0 0.0
    %274 = vmatpush2.xpose.msra.mxu0 0.0
    %275 = vmatprep.subr.mxu0 0.0
    %276 = vmatpush2.xpose.msra.mxu0 0.0
    %277 = vmatprep.subr.mxu0 0.0
    %278 = vmatpush2.xpose.msra.mxu0 0.0
    %279 = vmatprep.subr.mxu0 0.0
    %280 = vmatpush2.xpose.msra.mxu0 0.0
    %281 = vmatprep.subr.mxu0 0.0
    %282 = vmatpush2.xpose.msra.mxu0 0.0
    %283 = vmatprep.subr.mxu0 0.0
    %284 = vmatpush2.xpose.msra.mxu0 0.0
    %285 = vmatprep.mubr.f32.mxu0 0.0
    %286 = vmatmul.mubr.f32.gmra.mxu0 %v216
    %v287 = vpop.f32.mrf.mxu0
    %v288 = vadd.f32 0.0, %v287
    %v289 = vpop.f32.mrf.mxu0
    %290 = vdwg.mxu0
    %v291 = vmax.f32 %v288, 0.0
    %vm292 = vcmask 31744
    %v294 = vsel %vm292, %v291, 0
    %v297 = vsel %vm292, %v210, 0
    %v300 = vsel %vm292, %v211, 0
    %v303 = vsel %vm292, %v212, 0
    %v306 = vsel %vm292, %v213, 0
    %308 = vmatprep.subr.mxu0 0.0
    %309 = vmatpush1.xpose.msra.mxu0 0.0
    %310 = vmatprep.subr.mxu0 0.0
    %311 = vmatpush1.xpose.msra.mxu0 0.0
    %312 = vmatprep.subr.mxu0 0.0
    %313 = vmatpush1.xpose.msra.mxu0 0.0
    %314 = vmatprep.subr.mxu0 0.0
    %315 = vmatpush1.xpose.msra.mxu0 0.0
    %316 = vmatprep.subr.mxu0 0.0
    %317 = vmatpush1.xpose.msra.mxu0 0.0
    %318 = vmatprep.subr.mxu0 0.0
    %319 = vmatpush1.xpose.msra.mxu0 0.0
    %320 = vmatprep.subr.mxu0 0.0
    %321 = vmatpush1.xpose.msra.mxu0 0.0
    %322 = vmatprep.subr.mxu0 0.0
    %323 = vmatpush1.xpose.msra.mxu0 0.0
    %324 = vmatprep.subr.mxu0 0.0
    %325 = vmatpush1.xpose.msra.mxu0 0.0
    %326 = vmatprep.subr.mxu0 0.0
    %327 = vmatpush1.xpose.msra.mxu0 0.0
    %328 = vmatprep.subr.mxu0 0.0
    %329 = vmatpush1.xpose.msra.mxu0 0.0
    %330 = vmatprep.subr.mxu0 0.0
    %331 = vmatpush1.xpose.msra.mxu0 0.0
    %332 = vmatprep.subr.mxu0 0.0
    %333 = vmatpush1.xpose.msra.mxu0 %v306
    %334 = vmatprep.subr.mxu0 0.0
    %335 = vmatpush1.xpose.msra.mxu0 %v303
    %336 = vmatprep.subr.mxu0 0.0
    %337 = vmatpush1.xpose.msra.mxu0 %v300
    %338 = vmatprep.subr.mxu0 0.0
    %339 = vmatpush1.xpose.msra.mxu0 %v297
    %340 = vmatprep.subr.mxu0 0.0
    %341 = vmatpush2.xpose.msra.mxu0 0.0
    %342 = vmatprep.subr.mxu0 0.0
    %343 = vmatpush2.xpose.msra.mxu0 0.0
    %344 = vmatprep.subr.mxu0 0.0
    %345 = vmatpush2.xpose.msra.mxu0 0.0
    %346 = vmatprep.subr.mxu0 0.0
    %347 = vmatpush2.xpose.msra.mxu0 0.0
    %348 = vmatprep.subr.mxu0 0.0
    %349 = vmatpush2.xpose.msra.mxu0 0.0
    %350 = vmatprep.subr.mxu0 0.0
    %351 = vmatpush2.xpose.msra.mxu0 0.0
    %352 = vmatprep.subr.mxu0 0.0
    %353 = vmatpush2.xpose.msra.mxu0 0.0
    %354 = vmatprep.subr.mxu0 0.0
    %355 = vmatpush2.xpose.msra.mxu0 0.0
    %356 = vmatprep.subr.mxu0 0.0
    %357 = vmatpush2.xpose.msra.mxu0 0.0
    %358 = vmatprep.subr.mxu0 0.0
    %359 = vmatpush2.xpose.msra.mxu0 0.0
    %360 = vmatprep.subr.mxu0 0.0
    %361 = vmatpush2.xpose.msra.mxu0 0.0
    %362 = vmatprep.subr.mxu0 0.0
    %363 = vmatpush2.xpose.msra.mxu0 0.0
    %364 = vmatprep.subr.mxu0 0.0
    %365 = vmatpush2.xpose.msra.mxu0 0.0
    %366 = vmatprep.subr.mxu0 0.0
    %367 = vmatpush2.xpose.msra.mxu0 0.0
    %368 = vmatprep.subr.mxu0 0.0
    %369 = vmatpush2.xpose.msra.mxu0 0.0
    %370 = vmatprep.subr.mxu0 0.0
    %371 = vmatpush2.xpose.msra.mxu0 0.0
    %372 = vmatprep.mubr.f32.mxu0 0.0
    %373 = vmatmul.mubr.f32.gmra.mxu0 %v294
    %v374 = vpop.f32.mrf.mxu0
    %v375 = vadd.f32 0.0, %v374
    %v376 = vpop.f32.mrf.mxu0
    %377 = vdwg.mxu0
    %v379 = vrot.slane %v375, 2
    %v381 = vadd.f32 %v375, %v379
    %v382 = vxor.u32 %v381, 2147483648
    %v383 = vmul.f32 %v382, 1.442695
    %v384 = vpow.pop %v383
    %v385 = vadd.f32 %v384, 1.0
    %v386 = vrcp.pop %v385
    %v387 = vmul.f32 1.0, %v386
    %v388 = vlaneseq
    %v389 = vshrl.u32 %v388, 7
    %v390 = vsub.s32 0, %v389
    %v391 = vrot.slane %v387, %v390
    %393 = vbcast.lane.b32.xlu0 %v391, 256
    %v394 = vpop.permute.xlu0 %393
    %s396 = sor.u32 256, 8
    %397 = vbcast.lane.b32.xlu0 %v391, %s396
    %v398 = vpop.permute.xlu0 %397
    %s400 = sor.u32 256, 16
    %401 = vbcast.lane.b32.xlu0 %v391, %s400
    %v402 = vpop.permute.xlu0 %401
    %s404 = sor.u32 256, 24
    %405 = vbcast.lane.b32.xlu0 %v391, %s404
    %v406 = vpop.permute.xlu0 %405
    %v407 = vlaneseq
    %v408 = vshrl.u32 %v407, 7
    %v409 = vsub.s32 1, %v408
    %v410 = vrot.slane %v387, %v409
    %412 = vbcast.lane.b32.xlu0 %v410, 256
    %v413 = vpop.permute.xlu0 %412
    %s415 = sor.u32 256, 8
    %416 = vbcast.lane.b32.xlu0 %v410, %s415
    %v417 = vpop.permute.xlu0 %416
    %s419 = sor.u32 256, 16
    %420 = vbcast.lane.b32.xlu0 %v410, %s419
    %v421 = vpop.permute.xlu0 %420
    %s423 = sor.u32 256, 24
    %424 = vbcast.lane.b32.xlu0 %v410, %s423
    %v425 = vpop.permute.xlu0 %424
    %v426 = vmul.f32 %v29, %v394
    %v427 = vmul.f32 %v30, %v394
    %v428 = vmul.f32 %v31, %v398
    %v429 = vmul.f32 %v32, %v398
    %v430 = vmul.f32 %v33, %v402
    %v431 = vmul.f32 %v34, %v402
    %v432 = vmul.f32 %v35, %v406
    %v433 = vmul.f32 %v36, %v406
    %v434 = vmul.f32 %v37, %v413
    %v435 = vmul.f32 %v38, %v413
    %v436 = vmul.f32 %v39, %v417
    %v437 = vmul.f32 %v40, %v417
    %v438 = vmul.f32 %v41, %v421
    %v439 = vmul.f32 %v42, %v421
    %v440 = vmul.f32 %v43, %v425
    %v441 = vmul.f32 %v44, %v425
    %442 = vst [vmem:[#allocation5] sm:$0xff] %v426
    %443 = vst [vmem:[#allocation5 + $0x8] sm:$0xff] %v427
    %444 = vst [vmem:[#allocation5 + $0x10] sm:$0xff] %v428
    %445 = vst [vmem:[#allocation5 + $0x18] sm:$0xff] %v429
    %446 = vst [vmem:[#allocation5 + $0x20] sm:$0xff] %v430
    %447 = vst [vmem:[#allocation5 + $0x28] sm:$0xff] %v431
    %448 = vst [vmem:[#allocation5 + $0x30] sm:$0xff] %v432
    %449 = vst [vmem:[#allocation5 + $0x38] sm:$0xff] %v433
    %450 = vst [vmem:[#allocation5 + $0x40] sm:$0xff] %v434
    %451 = vst [vmem:[#allocation5 + $0x48] sm:$0xff] %v435
    %452 = vst [vmem:[#allocation5 + $0x50] sm:$0xff] %v436
    %453 = vst [vmem:[#allocation5 + $0x58] sm:$0xff] %v437
    %454 = vst [vmem:[#allocation5 + $0x60] sm:$0xff] %v438
    %455 = vst [vmem:[#allocation5 + $0x68] sm:$0xff] %v439
    %456 = vst [vmem:[#allocation5 + $0x70] sm:$0xff] %v440
    %457 = vst [vmem:[#allocation5 + $0x78] sm:$0xff] %v441
    // Predicated region
    $region18: #{tpu_custom_call.1} parent=1 // pred_check
      _
    $region19: #{tpu_custom_call.1} parent=1 // pred_check_branch
      %459 = sbr.rel (0) target = $region21
    $region20: #{tpu_custom_call.1} parent=1 // pred_region
      %s461 = ssub.s32 2048, 2048
      %462 = vsyncadd [#allocation4], %s461
      %s463 = sshll.u32 [#allocation5], 4
      %s464 = int_to_ptr.vmem [resolvable:$true] %s463
      %469 = dma.vmem_to_hbm [thread:$0]  %s464, 2048, %s3, [#allocation4], 256, 256, 16
    $region21: #{tpu_custom_call.1} parent=1 // pred_fallthru
      _
    // Predicated region
    $region22: #{tpu_custom_call.1} parent=1 // pred_check
      _
    $region23: #{tpu_custom_call.1} parent=1 // pred_check_branch
      %471 = sbr.rel (0) target = $region25
    $region24: #{tpu_custom_call.1} parent=1 // pred_region
      %472 = dma.done [#allocation4], 2048
    $region25: #{tpu_custom_call.1} parent=1 // pred_fallthru
      _
    %473 = vsyncpa [#allocation3], 1
    %474 = vsyncpa [#allocation4], 1

</llo_original>
